<compile_context>
chip_gen: v7x
topology: tpu7x:2x2x1
jax: 0.10.0
libtpu: 0.0.40
codegen_flags: <defaults>
</compile_context>

<pallas_src>
import functools
import math

import jax
import jax.numpy as jnp
from jax import lax
from jax.experimental import pallas as pl
from jax.experimental.pallas import tpu as pltpu


# ---------------------------------------------------------------------------
# Kernels
# ---------------------------------------------------------------------------
def _broadcast_pe_rows(pe_ref, ts, b, d):
    """(ts, D) pe block -> (ts*B, D): flat row r gets pe[r // B]."""
    if b == 1:
        return pe_ref[...]
    return jnp.broadcast_to(pe_ref[...][:, None, :], (ts, b, d)).reshape(ts * b, d)


def _pe_add_kernel(x_ref, pe_ref, o_ref, *, ts, b, d):
    """Eval-mode forward: out = x + pe (dropout is identity at eval)."""
    pe_rows = _broadcast_pe_rows(pe_ref, ts, b, d)
    o_ref[...] = (x_ref[...] + pe_rows).astype(o_ref.dtype)


def _pe_add_dropout_kernel(seed_ref, x_ref, pe_ref, o_ref, *, p, ts, b, d):
    """Train-mode forward: out = dropout(x + pe, p) with inverted scaling."""
    seed_u = lax.convert_element_type(seed_ref[0], jnp.uint32)
    row0 = lax.convert_element_type(pl.program_id(0) * (ts * b), jnp.uint32)

    rows = lax.broadcasted_iota(jnp.uint32, (ts * b, d), 0) + row0
    cols = lax.broadcasted_iota(jnp.uint32, (ts * b, d), 1)
    idx = rows * jnp.uint32(d) + cols

    # lowbias32 integer mix (full avalanche) keyed by element index + seed.
    h = idx ^ (seed_u * jnp.uint32(0x9E3779B9))
    h = h ^ (h >> jnp.uint32(16))
    h = h * jnp.uint32(0x7FEB352D)
    h = h ^ (h >> jnp.uint32(15))
    h = h * jnp.uint32(0x846CA68B)
    h = h ^ (h >> jnp.uint32(16))

    thresh = jnp.uint32(min(int(round(p * (2 ** 32))), 2 ** 32 - 1))
    keep = h >= thresh  # P(drop) ~= p

    pe_rows = _broadcast_pe_rows(pe_ref, ts, b, d)
    y = x_ref[...].astype(jnp.float32) + pe_rows.astype(jnp.float32)
    scale = jnp.float32(1.0 / (1.0 - p))
    o_ref[...] = jnp.where(keep, y * scale, jnp.float32(0.0)).astype(o_ref.dtype)


# ---------------------------------------------------------------------------
# Parameter setup (plain JAX) — mirrors the PyTorch __init__ buffer `pe`
# ---------------------------------------------------------------------------
def make_positional_encoding(d_model, max_seq_len=5000, dtype=jnp.float32):
    pos = jnp.arange(max_seq_len, dtype=jnp.float32)[:, None]            # (L, 1)
    div_term = jnp.power(
        10000.0, jnp.arange(0, d_model, 2, dtype=jnp.float32) / d_model  # (D/2,)
    )
    ang = pos / div_term                                                  # (L, D/2)
    pe = jnp.zeros((max_seq_len, 1, d_model), dtype)
    pe = pe.at[:, 0, 0::2].set(jnp.sin(ang).astype(dtype))
    pe = pe.at[:, 0, 1::2].set(jnp.cos(ang).astype(dtype))
    return pe                                                             # (L, 1, D)


# ---------------------------------------------------------------------------
# Wrapper
# ---------------------------------------------------------------------------
def positional_encoding_forward(x, pe, *, p=0.1, training=False, seed=0,
                                target_block_bytes=4 * 1024 * 1024):
    """x: (S, B, D), pe: (max_seq_len, 1, D). Returns (S, B, D)."""
    S, B, D = x.shape
    L = pe.shape[0]
    assert S <= L, "sequence longer than positional-encoding buffer"
    assert pe.shape[1] == 1 and pe.shape[2] == D
    assert 0.0 <= p < 1.0

    # Lane-dense layout: flatten (S, B, D) -> (S*B, D); free for row-major x.
    x_flat = x.reshape(S * B, D)

    # Tile over whole sequence positions so the pe broadcast stays contiguous.
    # ts*B must be a multiple of 8 (sublanes) unless the block is the full
    # extent; blocks target ~target_block_bytes so the pipeline double-buffers.
    itemsize = jnp.dtype(x.dtype).itemsize
    bytes_per_pos = B * D * itemsize
    m = 8 // math.gcd(B, 8)                      # smallest ts with ts*B % 8 == 0
    ts = max(m, (max(1, target_block_bytes // bytes_per_pos) // m) * m)
    ts = min(ts, S)
    grid = (pl.cdiv(S, ts),)

    x_spec = pl.BlockSpec((ts * B, D), lambda i: (i, 0))
    pe_spec = pl.BlockSpec((ts, None, D), lambda i: (i, 0, 0))   # middle dim squeezed
    out_spec = pl.BlockSpec((ts * B, D), lambda i: (i, 0))
    out_shape = jax.ShapeDtypeStruct((S * B, D), x.dtype)

    compiler_params = pltpu.CompilerParams(
        dimension_semantics=("parallel",),           # megacore-shardable
        vmem_limit_bytes=32 * 1024 * 1024,           # headroom; fits v7x 64 MiB VMEM
    )
    cost_estimate = pl.CostEstimate(
        flops=S * B * D,
        transcendentals=0,
        bytes_accessed=2 * S * B * D * itemsize + S * D * itemsize,
    )

    if (not training) or p == 0.0:
        out_flat = pl.pallas_call(
            functools.partial(_pe_add_kernel, ts=ts, b=B, d=D),
            out_shape=out_shape,
            grid_spec=pltpu.PrefetchScalarGridSpec(
                num_scalar_prefetch=0,
                grid=grid,
                in_specs=[x_spec, pe_spec],
                out_specs=out_spec,
            ),
            compiler_params=compiler_params,
            cost_estimate=cost_estimate,
        )(x_flat, pe)
    else:
        seed_arr = jnp.asarray([seed], dtype=jnp.int32)
        out_flat = pl.pallas_call(
            functools.partial(_pe_add_dropout_kernel, p=float(p), ts=ts, b=B, d=D),
            out_shape=out_shape,
            grid_spec=pltpu.PrefetchScalarGridSpec(
                num_scalar_prefetch=0,
                grid=grid,
                in_specs=[
                    pl.BlockSpec(memory_space=pltpu.MemorySpace.SMEM),
                    x_spec,
                    pe_spec,
                ],
                out_specs=out_spec,
            ),
            compiler_params=compiler_params,
            cost_estimate=cost_estimate,
        )(seed_arr, x_flat, pe)

    return out_flat.reshape(S, B, D)


# ---------------------------------------------------------------------------
# Demo
# ---------------------------------------------------------------------------
if __name__ == "__main__":
    seq_len, batch, d_model = 64, 4, 128      # lane-dense: D multiple of 128
    max_seq_len = 128
    p = 0.1

    key = jax.random.PRNGKey(0)
    x = jax.random.normal(key, (seq_len, batch, d_model), dtype=jnp.float32)
    pe = make_positional_encoding(d_model, max_seq_len, dtype=x.dtype)

    # Small block target so the demo exercises the multi-tile pipeline (8 tiles).
    out = positional_encoding_forward(
        x, pe, p=p, training=False, target_block_bytes=16 * 1024)
    out = jax.block_until_ready(out)

    ref = x + pe[:seq_len]
    assert out.shape == (seq_len, batch, d_model)
    assert jnp.allclose(out, ref, atol=1e-6), "mismatch vs reference (eval)"

    # Training-mode (dropout) path: every output is either 0 (dropped) or
    # (x + pe) / (1 - p); drop fraction should be roughly p.
    out_train = jax.block_until_ready(
        positional_encoding_forward(
            x, pe, p=p, training=True, seed=42, target_block_bytes=16 * 1024))
    assert out_train.shape == (seq_len, batch, d_model)
    scale = 1.0 / (1.0 - p)
    ok = jnp.where(out_train == 0, True,
                   jnp.isclose(out_train, ref * scale, atol=1e-5, rtol=1e-5))
    assert bool(jnp.all(ok)), "kept elements do not match scaled reference"
    drop_frac = float(jnp.mean((out_train == 0).astype(jnp.float32)))
    assert 0.0 < drop_frac < 0.3, f"unexpected drop fraction {drop_frac}"

    print("KERNEL_OK")
</pallas_src>

<mosaic_0001>
module attributes {stable_mosaic.version = 11 : i64} {
  func.func @_pe_add_kernel(%arg0: i32, %arg1: memref<32x128xf32, #tpu.memory_space<vmem>>, %arg2: memref<8x1x128xf32, #tpu.memory_space<vmem>>, %arg3: memref<32x128xf32, #tpu.memory_space<vmem>>) attributes {dimension_semantics = [#tpu.dimension_semantics<parallel>], iteration_bounds = array<i64: 8>, scalar_prefetch = 0 : i64, scratch_operands = 0 : i64, tpu.core_type = #tpu.core_type<tc>, window_params = [{transform_indices = @transform_0, window_bounds = array<i64: 32, 128>}, {transform_indices = @transform_1, window_bounds = array<i64: 8, 1, 128>}, {transform_indices = @transform_2, window_bounds = array<i64: 32, 128>}]} {
    %c0 = arith.constant 0 : index
    %c0_0 = arith.constant 0 : index
    %c0_1 = arith.constant 0 : index
    %0 = vector.load %arg2[%c0, %c0_0, %c0_1] : memref<8x1x128xf32, #tpu.memory_space<vmem>>, vector<8x1x128xf32>
    %1 = vector.shape_cast %0 : vector<8x1x128xf32> to vector<8x128xf32>
    %2 = vector.shape_cast %1 : vector<8x128xf32> to vector<8x1x128xf32>
    %3 = vector.shape_cast %2 : vector<8x1x128xf32> to vector<8x1x128xf32>
    %4 = vector.broadcast %3 : vector<8x1x128xf32> to vector<8x4x128xf32>
    %5 = vector.shape_cast %4 : vector<8x4x128xf32> to vector<32x128xf32>
    %c0_2 = arith.constant 0 : index
    %c0_3 = arith.constant 0 : index
    %6 = vector.load %arg1[%c0_2, %c0_3] : memref<32x128xf32, #tpu.memory_space<vmem>>, vector<32x128xf32>
    %7 = arith.addf %6, %5 : vector<32x128xf32>
    %c0_4 = arith.constant 0 : index
    %c0_5 = arith.constant 0 : index
    %8 = vector.load %arg3[%c0_4, %c0_5] : memref<32x128xf32, #tpu.memory_space<vmem>>, vector<32x128xf32>
    tpu.vector_store %arg3[%c0_4, %c0_5], %7 {strides = array<i32>} : memref<32x128xf32, #tpu.memory_space<vmem>>, vector<32x128xf32>,
    return
  }
  func.func @transform_0(%arg0: i32) -> (i32, i32) {
    %c0_i32 = arith.constant 0 : i32
    %c0_i32_0 = arith.constant 0 : i32
    return %arg0, %c0_i32 : i32, i32
  }
  func.func @transform_1(%arg0: i32) -> (i32, i32, i32) {
    %c0_i32 = arith.constant 0 : i32
    %c0_i32_0 = arith.constant 0 : i32
    %c0_i32_1 = arith.constant 0 : i32
    return %arg0, %c0_i32, %c0_i32_0 : i32, i32, i32
  }
  func.func @transform_2(%arg0: i32) -> (i32, i32) {
    %c0_i32 = arith.constant 0 : i32
    %c0_i32_0 = arith.constant 0 : i32
    return %arg0, %c0_i32 : i32, i32
  }
}

</mosaic_0001>

<llo_original>
// kernel: tpu_custom_call.1
$region0: #{tpu_custom_call.1}
  #allocation0 [shape = 'u32[]', space=smem, size = 0x4, offset = 0x4, fixed_abs, tag = 'smem constant byte address 0x4 - core index']
  #allocation1 [shape = 'u32[144,128]{1,0:T(1,128)}', space=vmem, size = 0x12000, scoped, tag = 'internal scratch']
  %s0 = inlined_call_operand.hbm [shape: f32[256,128], index: 0, kind: input, shape index: {}]
  %s1 = inlined_call_operand.hbm [shape: f32[128,1,128], index: 1, kind: input, shape index: {}]
  %s2 = inlined_call_operand.hbm [shape: f32[256,128], index: 2, kind: output, shape index: {}]
  %s3 = sld [smem:[#allocation0]]
  $region49: #{tpu_custom_call.1} parent=0
    _
  %s5 = ssub.s32 1, %s3
  %s6 = scalar_select 0, %s5, %s3
  $region1: #{tpu_custom_call.1} parent=0
    #allocation2 [shape = 'u8[32768]{0}', space=vmem, size = 0x8000, scoped, tag = 'input window, operand 0']
    #allocation3 [shape = 's32[2]{0}', space=sflag, size = 0x8, scoped, tag = 'scoped memory for tpu_custom_call.1']
    #allocation4 [shape = 's32[2]{0}', space=sflag, size = 0x8, scoped, tag = 'scoped memory for tpu_custom_call.1']
    #allocation5 [shape = 'u8[8192]{0}', space=vmem, size = 0x2000, scoped, tag = 'input window, operand 1']
    #allocation6 [shape = 's32[2]{0}', space=sflag, size = 0x8, scoped, tag = 'scoped memory for tpu_custom_call.1']
    #allocation7 [shape = 'u8[32768]{0}', space=vmem, size = 0x8000, scoped, tag = 'output window, operand 0']
    %7 = vsyncpa [#allocation3], 0
    %s8 = scalar_lea.sflag [#allocation3], 1
    %9 = vsyncpa %s8, 0
    %10 = vsyncpa [#allocation6], 0
    %s11 = scalar_lea.sflag [#allocation6], 1
    %12 = vsyncpa %s11, 0
    %13 = vsyncpa [#allocation4], 0
    %s14 = scalar_lea.sflag [#allocation4], 1
    %15 = vsyncpa %s14, 0
    loop: start=0, step=1, limit=10
    $region2: #{tpu_custom_call.1} parent=1 // loop_pre_header
      _
    $region3: #{tpu_custom_call.1} parent=1 // loop_header
      %s17 = sphi 0, %s21
      %p18 = scmp.ge.s32.totalorder %s17, 10
      %s27 = sphi 0, %s29
      %s30 = sphi 0, %s27
      %s31 = sphi 0, %s30
      %s47 = sphi 0, %s31
      %s53 = sphi 0, %s55
      %s56 = sphi 0, %s53
      %s57 = sphi 0, %s56
      %s73 = sphi 0, %s57
      %s79 = sphi 0, %s81
      %s82 = sphi 0, %s79
      %s83 = sphi 0, %s82
      %s99 = sphi 0, %s83
    $region4: #{tpu_custom_call.1} parent=1 // loop_header_branch
      %20 = sbr.rel (%p18) target = $region8
    $region5: #{tpu_custom_call.1} parent=1 // loop_body
      %s22 = ssub.s32 %s17, 1
      %s23 = ssub.s32 %s17, 2
      %s24 = sadd.s32 %s17, 1
      %s25 = ssub.s32 %s17, %s24
      %p26 = scmp.eq.s32.totalorder %s25, 0
      %s28 = sadd.s32 %s27, 1
      %s29 = scalar_select %p26, %s27, %s28
      %p32 = pneg %p26
      %p33 = scmp.eq.s32.totalorder %s17, 7
      %p34 = por %p32, %p33
      %p35 = scmp.ne.s32.totalorder %s27, %s30
      %p36 = scmp.eq.s32.totalorder %s17, 0
      %p37 = por %p35, %p36
      %p38 = scmp.ne.s32.totalorder %s27, %s30
      %p39 = scmp.eq.s32.totalorder %s22, 7
      %p40 = por %p38, %p39
      %p41 = scmp.ne.s32.totalorder %s30, %s31
      %p42 = scmp.eq.s32.totalorder %s22, 0
      %p43 = por %p41, %p42
      %p44 = scmp.ne.s32.totalorder %s30, %s31
      %p45 = scmp.eq.s32.totalorder %s23, 7
      %p46 = por %p44, %p45
      %p48 = scmp.ne.s32.totalorder %s31, %s47
      %p49 = scmp.eq.s32.totalorder %s23, 0
      %p50 = por %p48, %p49
      %s51 = ssub.s32 %s17, %s24
      %p52 = scmp.eq.s32.totalorder %s51, 0
      %s54 = sadd.s32 %s53, 1
      %s55 = scalar_select %p52, %s53, %s54
      %p58 = pneg %p52
      %p59 = scmp.eq.s32.totalorder %s17, 7
      %p60 = por %p58, %p59
      %p61 = scmp.ne.s32.totalorder %s53, %s56
      %p62 = scmp.eq.s32.totalorder %s17, 0
      %p63 = por %p61, %p62
      %p64 = scmp.ne.s32.totalorder %s53, %s56
      %p65 = scmp.eq.s32.totalorder %s22, 7
      %p66 = por %p64, %p65
      %p67 = scmp.ne.s32.totalorder %s56, %s57
      %p68 = scmp.eq.s32.totalorder %s22, 0
      %p69 = por %p67, %p68
      %p70 = scmp.ne.s32.totalorder %s56, %s57
      %p71 = scmp.eq.s32.totalorder %s23, 7
      %p72 = por %p70, %p71
      %p74 = scmp.ne.s32.totalorder %s57, %s73
      %p75 = scmp.eq.s32.totalorder %s23, 0
      %p76 = por %p74, %p75
      %s77 = ssub.s32 %s17, %s24
      %p78 = scmp.eq.s32.totalorder %s77, 0
      %s80 = sadd.s32 %s79, 1
      %s81 = scalar_select %p78, %s79, %s80
      %p84 = pneg %p78
      %p85 = scmp.eq.s32.totalorder %s17, 7
      %p86 = por %p84, %p85
      %p87 = scmp.ne.s32.totalorder %s79, %s82
      %p88 = scmp.eq.s32.totalorder %s17, 0
      %p89 = por %p87, %p88
      %p90 = scmp.ne.s32.totalorder %s79, %s82
      %p91 = scmp.eq.s32.totalorder %s22, 7
      %p92 = por %p90, %p91
      %p93 = scmp.ne.s32.totalorder %s82, %s83
      %p94 = scmp.eq.s32.totalorder %s22, 0
      %p95 = por %p93, %p94
      %p96 = scmp.ne.s32.totalorder %s82, %s83
      %p97 = scmp.eq.s32.totalorder %s23, 7
      %p98 = por %p96, %p97
      %p100 = scmp.ne.s32.totalorder %s83, %s99
      %p101 = scmp.eq.s32.totalorder %s23, 0
      %p102 = por %p100, %p101
      %p103 = scmp.le.s32.totalorder 1, %s17
      %p104 = scmp.lt.s32.totalorder %s17, 9
      %p105 = pnand %p103, %p104
      %p106 = pneg %p105
      // Predicated region
      $region9: #{tpu_custom_call.1} parent=5 // pred_check
        _
      $region10: #{tpu_custom_call.1} parent=5 // pred_check_branch
        %108 = sbr.rel (%p105) target = $region12
      $region11: #{tpu_custom_call.1} parent=5 // pred_region
        %s109 = ssub.s32 %s17, 1
      $region12: #{tpu_custom_call.1} parent=5 // pred_fallthru
        _
      %p110 = scmp.lt.s32.totalorder %s17, 8
      // Predicated region
      $region13: #{tpu_custom_call.1} parent=5 // pred_check
        %p111 = pneg %p110
      $region14: #{tpu_custom_call.1} parent=5 // pred_check_branch
        %113 = sbr.rel (%p111) target = $region16
      $region15: #{tpu_custom_call.1} parent=5 // pred_region
        // Predicated region
        $region17: #{tpu_custom_call.1} parent=15 // pred_check
          %p114 = pneg %p37
        $region18: #{tpu_custom_call.1} parent=15 // pred_check_branch
          %116 = sbr.rel (%p114) target = $region20
        $region19: #{tpu_custom_call.1} parent=15 // pred_region
          %s117 = sand.u32 %s27, 1
          %s118 = scalar_lea.sflag [#allocation3], %s117
          %s119 = sand.u32 %s27, 1
          %s120 = smul.addr %s119, 32
          %s121 = scalar_lea.vmem [#allocation2], %s120
          %s122 = smul.u32 4, %s17
          %s124 = ssub.s32 512, 512
          %125 = vsyncadd %s118, %s124
          %s126 = smul.addr %s122, 128
          %s127 = scalar_lea.hbm %s0, %s126
          %s128 = sshll.u32 %s121, 4
          %s129 = int_to_ptr.vmem [resolvable:$true] %s128
          %134 = dma.hbm_to_vmem [thread:$0]  %s127, 512, %s129, %s118, 128, 128, 8
        $region20: #{tpu_custom_call.1} parent=15 // pred_fallthru
          _
        // Predicated region
        $region21: #{tpu_custom_call.1} parent=15 // pred_check
          %p135 = pneg %p63
        $region22: #{tpu_custom_call.1} parent=15 // pred_check_branch
          %137 = sbr.rel (%p135) target = $region24
        $region23: #{tpu_custom_call.1} parent=15 // pred_region
          %s138 = sand.u32 %s53, 1
          %s139 = scalar_lea.sflag [#allocation6], %s138
          %s140 = sand.u32 %s53, 1
          %s141 = smul.addr %s140, 8
          %s142 = scalar_lea.vmem [#allocation5], %s141
          %s143 = smul.u32 8, %s17
          %s145 = ssub.s32 128, 128
          %146 = vsyncadd %s139, %s145
          %s147 = smul.addr %s143, 16
          %s148 = scalar_lea.hbm %s1, %s147
          %s149 = sshll.u32 %s142, 4
          %s150 = int_to_ptr.vmem [resolvable:$true] %s149
          %155 = dma.hbm_to_vmem [thread:$0]  %s148, 128, %s150, %s139, 16, 16, 1
        $region24: #{tpu_custom_call.1} parent=15 // pred_fallthru
          _
      $region16: #{tpu_custom_call.1} parent=5 // pred_fallthru
        _
      %p156 = scmp.le.s32.totalorder 1, %s17
      %p157 = scmp.lt.s32.totalorder %s17, 9
      %p158 = pnand %p156, %p157
      %p159 = pneg %p158
      // Predicated region
      $region25: #{tpu_custom_call.1} parent=5 // pred_check
        _
      $region26: #{tpu_custom_call.1} parent=5 // pred_check_branch
        %161 = sbr.rel (%p158) target = $region28
      $region27: #{tpu_custom_call.1} parent=5 // pred_region
        %s162 = ssub.s32 %s17, 1
        %s163 = sand.u32 %s30, 1
        %s164 = scalar_lea.sflag [#allocation3], %s163
        %s165 = sand.u32 %s30, 1
        %s166 = smul.addr %s165, 32
        %s167 = scalar_lea.vmem [#allocation2], %s166
        // Predicated region
        $region29: #{tpu_custom_call.1} parent=27 // pred_check
          %p168 = pneg %p43
        $region30: #{tpu_custom_call.1} parent=27 // pred_check_branch
          %170 = sbr.rel (%p168) target = $region32
        $region31: #{tpu_custom_call.1} parent=27 // pred_region
          %171 = dma.done %s164, 512
        $region32: #{tpu_custom_call.1} parent=27 // pred_fallthru
          _
        %s172 = sand.u32 %s56, 1
        %s173 = scalar_lea.sflag [#allocation6], %s172
        %s174 = sand.u32 %s56, 1
        %s175 = smul.addr %s174, 8
        %s176 = scalar_lea.vmem [#allocation5], %s175
        // Predicated region
        $region33: #{tpu_custom_call.1} parent=27 // pred_check
          %p177 = pneg %p69
        $region34: #{tpu_custom_call.1} parent=27 // pred_check_branch
          %179 = sbr.rel (%p177) target = $region36
        $region35: #{tpu_custom_call.1} parent=27 // pred_region
          %180 = dma.done %s173, 128
        $region36: #{tpu_custom_call.1} parent=27 // pred_fallthru
          _
        %s181 = sand.u32 %s30, 1
        %s182 = scalar_lea.sflag [#allocation3], %s181
        %s183 = sand.u32 %s30, 1
        %s184 = smul.addr %s183, 32
        %s185 = scalar_lea.vmem [#allocation2], %s184
        %p186 = pneg %p43
        %p187 = pneg %p40
        %s188 = sand.u32 %s56, 1
        %s189 = scalar_lea.sflag [#allocation6], %s188
        %s190 = sand.u32 %s56, 1
        %s191 = smul.addr %s190, 8
        %s192 = scalar_lea.vmem [#allocation5], %s191
        %p193 = pneg %p69
        %p194 = pneg %p66
        %p195 = pneg %p95
        %p196 = pneg %p92
        %s197 = sand.u32 %s82, 1
        %s198 = scalar_lea.sflag [#allocation4], %s197
        %s199 = sand.u32 %s82, 1
        %s200 = smul.addr %s199, 32
        %s201 = scalar_lea.vmem [#allocation7], %s200
        %s202 = smul.u32 4, %s22
        %s203 = smul.u32 8, %s22
        %s204 = smul.u32 4, %s22
        %v205 = vld [vmem:[%s176] sm:$0x1]
        %v206 = vld [vmem:[%s176 + $0x1] sm:$0x1]
        %v207 = vld [vmem:[%s176 + $0x2] sm:$0x1]
        %v208 = vld [vmem:[%s176 + $0x3] sm:$0x1]
        %v209 = vld [vmem:[%s176 + $0x4] sm:$0x1]
        %v210 = vld [vmem:[%s176 + $0x5] sm:$0x1]
        %v211 = vld [vmem:[%s176 + $0x6] sm:$0x1]
        %v212 = vld [vmem:[%s176 + $0x7] sm:$0x1]
        %v221 = vlaneseq
        %v222 = vshrl.u32 %v221, 7
        %v223 = vsub.s32 0, %v222
        %v224 = vrot.slane %v205, %v223
        %v225 = vlaneseq
        %v226 = vshrl.u32 %v225, 7
        %v227 = vsub.s32 0, %v226
        %v228 = vrot.slane %v206, %v227
        %v229 = vlaneseq
        %v230 = vshrl.u32 %v229, 7
        %v231 = vsub.s32 0, %v230
        %v232 = vrot.slane %v207, %v231
        %v233 = vlaneseq
        %v234 = vshrl.u32 %v233, 7
        %v235 = vsub.s32 0, %v234
        %v236 = vrot.slane %v208, %v235
        %v237 = vlaneseq
        %v238 = vshrl.u32 %v237, 7
        %v239 = vsub.s32 0, %v238
        %v240 = vrot.slane %v209, %v239
        %v241 = vlaneseq
        %v242 = vshrl.u32 %v241, 7
        %v243 = vsub.s32 0, %v242
        %v244 = vrot.slane %v210, %v243
        %v245 = vlaneseq
        %v246 = vshrl.u32 %v245, 7
        %v247 = vsub.s32 0, %v246
        %v248 = vrot.slane %v211, %v247
        %v249 = vlaneseq
        %v250 = vshrl.u32 %v249, 7
        %v251 = vsub.s32 0, %v250
        %v252 = vrot.slane %v212, %v251
        %v253 = vld [vmem:[%s167] sm:$0xff]
        %v254 = vld [vmem:[%s167 + $0x8] sm:$0xff]
        %v255 = vld [vmem:[%s167 + $0x10] sm:$0xff]
        %v256 = vld [vmem:[%s167 + $0x18] sm:$0xff]
        %v257 = vcombine.low %v224, %v228
        %v258 = vcombine.low %v232, %v236
        %v259 = vcombine.low %v240, %v244
        %v260 = vcombine.low %v248, %v252
        %v265 = vadd.f32 %v253, %v257
        %v266 = vadd.f32 %v254, %v258
        %v267 = vadd.f32 %v255, %v259
        %v268 = vadd.f32 %v256, %v260
        %269 = vst [vmem:[%s201] sm:$0xff] %v265
        %270 = vst [vmem:[%s201 + $0x8] sm:$0xff] %v266
        %271 = vst [vmem:[%s201 + $0x10] sm:$0xff] %v267
        %272 = vst [vmem:[%s201 + $0x18] sm:$0xff] %v268
        %s273 = sand.u32 %s82, 1
        %s274 = scalar_lea.sflag [#allocation4], %s273
        %s275 = sand.u32 %s82, 1
        %s276 = smul.addr %s275, 32
        %s277 = scalar_lea.vmem [#allocation7], %s276
        // Predicated region
        $region37: #{tpu_custom_call.1} parent=27 // pred_check
          %p278 = pneg %p92
        $region38: #{tpu_custom_call.1} parent=27 // pred_check_branch
          %280 = sbr.rel (%p278) target = $region40
        $region39: #{tpu_custom_call.1} parent=27 // pred_region
          %s281 = smul.u32 4, %s22
          %s283 = ssub.s32 512, 512
          %284 = vsyncadd %s274, %s283
          %s285 = smul.addr %s281, 128
          %s286 = scalar_lea.hbm %s2, %s285
          %s287 = sshll.u32 %s277, 4
          %s288 = int_to_ptr.vmem [resolvable:$true] %s287
          %293 = dma.vmem_to_hbm [thread:$0]  %s288, 512, %s286, %s274, 128, 128, 8
        $region40: #{tpu_custom_call.1} parent=27 // pred_fallthru
          _
      $region28: #{tpu_custom_call.1} parent=5 // pred_fallthru
        _
      %p294 = scmp.le.s32.totalorder 2, %s17
      // Predicated region
      $region41: #{tpu_custom_call.1} parent=5 // pred_check
        %p295 = pneg %p294
      $region42: #{tpu_custom_call.1} parent=5 // pred_check_branch
        %297 = sbr.rel (%p295) target = $region44
      $region43: #{tpu_custom_call.1} parent=5 // pred_region
        %s298 = ssub.s32 %s17, 2
        // Predicated region
        $region45: #{tpu_custom_call.1} parent=43 // pred_check
          %p299 = pneg %p98
        $region46: #{tpu_custom_call.1} parent=43 // pred_check_branch
          %301 = sbr.rel (%p299) target = $region48
        $region47: #{tpu_custom_call.1} parent=43 // pred_region
          %s302 = sand.u32 %s83, 1
          %s303 = scalar_lea.sflag [#allocation4], %s302
          %s304 = sand.u32 %s83, 1
          %s305 = smul.addr %s304, 32
          %s306 = scalar_lea.vmem [#allocation7], %s305
          %307 = dma.done %s303, 512
        $region48: #{tpu_custom_call.1} parent=43 // pred_fallthru
          _
      $region44: #{tpu_custom_call.1} parent=5 // pred_fallthru
        _
    $region6: #{tpu_custom_call.1} parent=1 // loop_footer
      %s21 = sadd.s32 1, %s17
    $region7: #{tpu_custom_call.1} parent=1 // loop_footer_branch
      %16 = sbr.rel target = $region3
    $region8: #{tpu_custom_call.1} parent=1 // loop_exit
      _
    %308 = vsyncpa [#allocation3], 1
    %s309 = scalar_lea.sflag [#allocation3], 1
    %310 = vsyncpa %s309, 1
    %311 = vsyncpa [#allocation6], 1
    %s312 = scalar_lea.sflag [#allocation6], 1
    %313 = vsyncpa %s312, 1
    %314 = vsyncpa [#allocation4], 1
    %s315 = scalar_lea.sflag [#allocation4], 1
    %316 = vsyncpa %s315, 1

</llo_original>
